<compile_context>
chip_gen: v7x
topology: tpu7x:2x2x1
jax: 0.10.0
libtpu: 0.0.40
codegen_flags: <defaults>
</compile_context>

<pallas_src>
import functools

import jax
import jax.numpy as jnp
import numpy as np
from jax.experimental import pallas as pl
from jax.experimental.pallas import tpu as pltpu

LANE = 128
MAX_TILE = 1024                    # 512-1024 tiles reach ~85% of HBM roofline
VMEM_LIMIT = 48 * 1024 * 1024      # leave headroom on v7x's 64 MiB VMEM


def _round_up(n, m):
    return ((n + m - 1) // m) * m


def _pick_tile(n, max_tile=MAX_TILE):
    """Largest lane-aligned tile <= max_tile; pad N to a multiple of it."""
    t = min(max_tile, _round_up(max(n, 1), LANE))
    return t, _round_up(max(n, 1), t)


def _pad2(x, rows, cols, dtype):
    out = jnp.zeros((rows, cols), dtype)
    return out.at[: x.shape[0], : x.shape[1]].set(x.astype(dtype))


# ---------------------------------------------------------------------------
# Host-side schedule: which K-tiles of A_hat are nonzero for each row tile.
# (Batched graphs make A_hat block-diagonal -> most tiles are all-zero.)
# Built on host from the concrete adjacency, so the wrapper is not jittable
# end-to-end; the Pallas kernels themselves are fully compiled.
# ---------------------------------------------------------------------------
def _build_tile_schedule(a_dense, n_pad, tm, tk):
    gi, gk = n_pad // tm, n_pad // tk
    a = np.zeros((n_pad, n_pad), np.float32)
    a[: a_dense.shape[0], : a_dense.shape[1]] = np.asarray(a_dense)
    nz = np.any(a.reshape(gi, tm, gk, tk) != 0.0, axis=(1, 3))   # [gi, gk] bool
    knum = nz.sum(axis=1).astype(np.int32)                       # [gi]
    max_k = max(int(knum.max()), 1)
    ktiles = np.zeros((gi, max_k), np.int32)
    for i in range(gi):
        idx = np.nonzero(nz[i])[0]
        if idx.size:
            ktiles[i, : idx.size] = idx
            ktiles[i, idx.size:] = idx[-1]   # repeat last tile: no extra DMA, compute gated off
    nnz_tiles = int(knum.sum())
    return jnp.asarray(ktiles), jnp.asarray(knum), max_k, nnz_tiles


# ---------------------------------------------------------------------------
# Kernel 1: first GCN layer, H_out = relu((A_hat @ H_in) @ W1 + b1)
#   grid = (row tiles, nonzero-K tiles); f32 accumulator; weight matmul + bias
#   + ReLU fused into the K-loop finalize.  H_in is resident and sliced.
# ---------------------------------------------------------------------------
def _gcn_layer_kernel(ktiles_ref, knum_ref, a_ref, hin_ref, w_ref, b_ref,
                      hout_ref, acc_ref, *, tk):
    i = pl.program_id(0)
    j = pl.program_id(1)

    @pl.when(j == 0)
    def _():
        acc_ref[...] = jnp.zeros_like(acc_ref)

    @pl.when(j < knum_ref[i])
    def _():
        kt = ktiles_ref[i, j]
        start = pl.multiple_of(kt * tk, tk)
        acc_ref[...] += jnp.dot(a_ref[...], hin_ref[pl.ds(start, tk), :],
                                preferred_element_type=jnp.float32)

    @pl.when(j == pl.num_programs(1) - 1)
    def _():
        z = jnp.dot(acc_ref[...].astype(jnp.bfloat16), w_ref[...],
                    preferred_element_type=jnp.float32) + b_ref[...]
        hout_ref[...] = jnp.maximum(z, 0.0).astype(hout_ref.dtype)


def gcn_layer(a_hat, h_in, w, b, ktiles, knum, *, tm, tk, max_k, nnz_tiles):
    n_pad = a_hat.shape[0]
    c_in = h_in.shape[1]
    c_out = w.shape[1]
    grid = (n_pad // tm, max_k)

    flops = 2 * nnz_tiles * tm * tk * c_in + 2 * n_pad * c_in * c_out
    bytes_accessed = int(nnz_tiles * tm * tk * 2 + n_pad * c_in * 2
                         + c_in * c_out * 2 + c_out * 4 + n_pad * c_out * 2)

    return pl.pallas_call(
        functools.partial(_gcn_layer_kernel, tk=tk),
        out_shape=jax.ShapeDtypeStruct((n_pad, c_out), jnp.bfloat16),
        grid_spec=pltpu.PrefetchScalarGridSpec(
            num_scalar_prefetch=2,
            grid=grid,
            in_specs=[
                # A_hat: only the nonzero K-tiles of row tile i are fetched.
                pl.BlockSpec((tm, tk), lambda i, j, kt, kn: (i, kt[i, j])),
                # H_in: resident full block, sliced with pl.ds inside the kernel.
                pl.BlockSpec((n_pad, c_in), lambda i, j, kt, kn: (0, 0)),
                pl.BlockSpec((c_in, c_out), lambda i, j, kt, kn: (0, 0)),   # W (bf16)
                pl.BlockSpec((1, c_out), lambda i, j, kt, kn: (0, 0)),      # bias (f32)
            ],
            out_specs=pl.BlockSpec((tm, c_out), lambda i, j, kt, kn: (i, 0)),
            scratch_shapes=[pltpu.VMEM((tm, c_in), jnp.float32)],
        ),
        compiler_params=pltpu.CompilerParams(
            dimension_semantics=("parallel", "arbitrary"),
            vmem_limit_bytes=VMEM_LIMIT,
        ),
        cost_estimate=pl.CostEstimate(
            flops=flops, transcendentals=0, bytes_accessed=bytes_accessed),
    )(ktiles, knum, a_hat, h_in, w, b)


# ---------------------------------------------------------------------------
# Kernel 2: second GCN layer with the head fused into the finalize:
#   h2      = relu((A_hat @ H1) @ W2 + b2)        (never hits HBM)
#   out     = h2 @ Wlin + blin                    (per-node output)
#   pooled_i = P[:, rows(i)] @ h2                 (per-row-tile partial, summed in XLA)
# ---------------------------------------------------------------------------
def _gcn_layer2_head_kernel(ktiles_ref, knum_ref, a_ref, hin_ref, w_ref, b_ref,
                            wl_ref, bl_ref, p_ref, out_ref, pooled_ref, acc_ref,
                            *, tk):
    i = pl.program_id(0)
    j = pl.program_id(1)

    @pl.when(j == 0)
    def _():
        acc_ref[...] = jnp.zeros_like(acc_ref)

    @pl.when(j < knum_ref[i])
    def _():
        kt = ktiles_ref[i, j]
        start = pl.multiple_of(kt * tk, tk)
        acc_ref[...] += jnp.dot(a_ref[...], hin_ref[pl.ds(start, tk), :],
                                preferred_element_type=jnp.float32)

    @pl.when(j == pl.num_programs(1) - 1)
    def _():
        h2 = jnp.maximum(
            jnp.dot(acc_ref[...].astype(jnp.bfloat16), w_ref[...],
                    preferred_element_type=jnp.float32) + b_ref[...], 0.0)
        h2b = h2.astype(jnp.bfloat16)
        out_ref[...] = jnp.dot(h2b, wl_ref[...],
                               preferred_element_type=jnp.float32) + bl_ref[...]
        pooled_ref[0, :, :] = jnp.dot(p_ref[...], h2b,
                                      preferred_element_type=jnp.float32)


def gcn_layer2_head(a_hat, h_in, w2, b2, wl, bl, pool_mat, ktiles, knum,
                    *, tm, tk, max_k, nnz_tiles):
    n_pad = a_hat.shape[0]
    c_in = h_in.shape[1]
    h_out = w2.shape[1]
    o_out = wl.shape[1]
    g_pad = pool_mat.shape[0]
    grid0 = n_pad // tm
    grid = (grid0, max_k)

    flops = (2 * nnz_tiles * tm * tk * c_in + 2 * n_pad * c_in * h_out
             + 2 * n_pad * h_out * o_out + 2 * g_pad * n_pad * h_out)
    bytes_accessed = int(nnz_tiles * tm * tk * 2 + n_pad * c_in * 2
                         + (c_in * h_out + h_out * o_out + g_pad * n_pad) * 2
                         + n_pad * o_out * 4 + grid0 * g_pad * h_out * 4)

    return pl.pallas_call(
        functools.partial(_gcn_layer2_head_kernel, tk=tk),
        out_shape=(
            jax.ShapeDtypeStruct((n_pad, o_out), jnp.float32),       # per-node out
            jax.ShapeDtypeStruct((grid0, g_pad, h_out), jnp.float32),  # pooled partials
        ),
        grid_spec=pltpu.PrefetchScalarGridSpec(
            num_scalar_prefetch=2,
            grid=grid,
            in_specs=[
                pl.BlockSpec((tm, tk), lambda i, j, kt, kn: (i, kt[i, j])),     # A_hat
                pl.BlockSpec((n_pad, c_in), lambda i, j, kt, kn: (0, 0)),       # H1 resident
                pl.BlockSpec((c_in, h_out), lambda i, j, kt, kn: (0, 0)),       # W2 (bf16)
                pl.BlockSpec((1, h_out), lambda i, j, kt, kn: (0, 0)),          # b2  (f32)
                pl.BlockSpec((h_out, o_out), lambda i, j, kt, kn: (0, 0)),      # Wlin (bf16)
                pl.BlockSpec((1, o_out), lambda i, j, kt, kn: (0, 0)),          # blin (f32)
                pl.BlockSpec((g_pad, tm), lambda i, j, kt, kn: (0, i)),         # pool col tile
            ],
            out_specs=(
                pl.BlockSpec((tm, o_out), lambda i, j, kt, kn: (i, 0)),
                pl.BlockSpec((1, g_pad, h_out), lambda i, j, kt, kn: (i, 0, 0)),
            ),
            scratch_shapes=[pltpu.VMEM((tm, c_in), jnp.float32)],
        ),
        compiler_params=pltpu.CompilerParams(
            dimension_semantics=("parallel", "arbitrary"),
            vmem_limit_bytes=VMEM_LIMIT,
        ),
        cost_estimate=pl.CostEstimate(
            flops=flops, transcendentals=0, bytes_accessed=bytes_accessed),
    )(ktiles, knum, a_hat, h_in, w2, b2, wl, bl, pool_mat)


# ---------------------------------------------------------------------------
# Graph glue (outside the kernels)
# ---------------------------------------------------------------------------
def build_normalized_adjacency(edge_index, num_nodes):
    """Dense D^{-1/2}(A+I)D^{-1/2} with A[dst, src]=1 per edge (GCNConv)."""
    src, dst = edge_index[0], edge_index[1]
    a = jnp.zeros((num_nodes, num_nodes), jnp.float32).at[dst, src].set(1.0)
    a = a + jnp.eye(num_nodes, dtype=jnp.float32)
    deg = jnp.sum(a, axis=1)
    dinv = jnp.where(deg > 0, 1.0 / jnp.sqrt(deg), 0.0)
    return dinv[:, None] * a * dinv[None, :]


def build_mean_pool_matrix(batch, num_graphs):
    """P[g, i] = 1/count_g if batch[i] == g, so P @ H == global_mean_pool(H, batch)."""
    one_hot = (batch[None, :] == jnp.arange(num_graphs)[:, None]).astype(jnp.float32)
    counts = jnp.maximum(jnp.sum(one_hot, axis=1, keepdims=True), 1.0)
    return one_hot / counts


def gnn_encoder_forward(x, edge_index, batch, params, num_graphs, *, max_tile=MAX_TILE):
    """Full GNNEncoder (GCN, mean_pool). Returns (out [N, O], pooled [G, H])."""
    w1, b1, w2, b2, wl, bl = params
    n, in_ch = x.shape
    hidden = w1.shape[1]
    out_ch = wl.shape[1]

    tile, n_pad = _pick_tile(n, max_tile)
    tm = tk = tile
    c_pad = _round_up(in_ch, LANE)
    h_pad = _round_up(hidden, LANE)
    o_pad = _round_up(out_ch, LANE)
    g_pad = _round_up(num_graphs, 8)

    a_hat = build_normalized_adjacency(edge_index, n)
    pool_mat = build_mean_pool_matrix(batch, num_graphs)

    # Host-built nonzero-tile schedule (block-diagonal A_hat -> skip zero tiles).
    ktiles, knum, max_k, nnz_tiles = _build_tile_schedule(a_hat, n_pad, tm, tk)

    # Zero-pad to lane-dense, MXU-friendly shapes; bf16 MXU operands, f32 biases.
    a_hat_p = _pad2(a_hat, n_pad, n_pad, jnp.bfloat16)
    x_p = _pad2(x, n_pad, c_pad, jnp.bfloat16)
    pool_p = _pad2(pool_mat, g_pad, n_pad, jnp.bfloat16)
    w1_p = _pad2(w1, c_pad, h_pad, jnp.bfloat16)
    w2_p = _pad2(w2, h_pad, h_pad, jnp.bfloat16)
    wl_p = _pad2(wl, h_pad, o_pad, jnp.bfloat16)
    b1_p = _pad2(b1.reshape(1, -1), 1, h_pad, jnp.float32)
    b2_p = _pad2(b2.reshape(1, -1), 1, h_pad, jnp.float32)
    bl_p = _pad2(bl.reshape(1, -1), 1, o_pad, jnp.float32)

    h1 = gcn_layer(a_hat_p, x_p, w1_p, b1_p, ktiles, knum,
                   tm=tm, tk=tk, max_k=max_k, nnz_tiles=nnz_tiles)
    out_p, pooled_parts = gcn_layer2_head(a_hat_p, h1, w2_p, b2_p, wl_p, bl_p, pool_p,
                                          ktiles, knum, tm=tm, tk=tk, max_k=max_k,
                                          nnz_tiles=nnz_tiles)
    pooled = jnp.sum(pooled_parts, axis=0)   # tiny XLA reduction over row-tile partials

    return out_p[:n, :out_ch], pooled[:num_graphs, :hidden]


if __name__ == "__main__":
    # Deterministic problem: 3 graphs x 100 nodes, in=8, hidden=32, out=16.
    # max_tile=128 forces a multi-tile (row, K) grid so the accumulator,
    # block-sparse skipping, and fused-head paths are all exercised.
    num_graphs = 3
    nodes_per_graph = 100
    N = num_graphs * nodes_per_graph
    in_channels, hidden_channels, output_channels = 8, 32, 16

    key = jax.random.PRNGKey(0)
    k_x, k_w1, k_b1, k_w2, k_b2, k_wl, k_bl = jax.random.split(key, 7)

    x = jax.random.normal(k_x, (N, in_channels), jnp.float32)

    # Edge index: bidirectional ring inside each graph (shape [2, E]).
    srcs, dsts = [], []
    for g in range(num_graphs):
        off = g * nodes_per_graph
        for i in range(nodes_per_graph):
            j = (i + 1) % nodes_per_graph
            srcs += [off + i, off + j]
            dsts += [off + j, off + i]
    edge_index = jnp.array([srcs, dsts], dtype=jnp.int32)
    batch = jnp.repeat(jnp.arange(num_graphs, dtype=jnp.int32), nodes_per_graph)

    # Deterministic parameter init (weights stored pre-transposed: x @ W).
    w1 = jax.random.normal(k_w1, (in_channels, hidden_channels), jnp.float32) * 0.1
    b1 = jax.random.normal(k_b1, (hidden_channels,), jnp.float32) * 0.1
    w2 = jax.random.normal(k_w2, (hidden_channels, hidden_channels), jnp.float32) * 0.1
    b2 = jax.random.normal(k_b2, (hidden_channels,), jnp.float32) * 0.1
    wl = jax.random.normal(k_wl, (hidden_channels, output_channels), jnp.float32) * 0.1
    bl = jax.random.normal(k_bl, (output_channels,), jnp.float32) * 0.1
    params = (w1, b1, w2, b2, wl, bl)

    out, pooled = gnn_encoder_forward(x, edge_index, batch, params, num_graphs,
                                      max_tile=128)
    jax.block_until_ready((out, pooled))

    # Pure-JAX f32 reference of the same math (kernels use bf16 MXU operands).
    a_hat = build_normalized_adjacency(edge_index, N)
    pool_mat = build_mean_pool_matrix(batch, num_graphs)
    h1_want = jnp.maximum(a_hat @ (x @ w1) + b1[None, :], 0.0)
    h2_want = jnp.maximum(a_hat @ (h1_want @ w2) + b2[None, :], 0.0)
    out_want = h2_want @ wl + bl[None, :]
    pooled_want = pool_mat @ h2_want

    assert out.shape == (N, output_channels)
    assert pooled.shape == (num_graphs, hidden_channels)
    assert jnp.allclose(out, out_want, atol=3e-2, rtol=3e-2)
    assert jnp.allclose(pooled, pooled_want, atol=3e-2, rtol=3e-2)

    print("KERNEL_OK")
</pallas_src>

<mosaic_0001>
module attributes {stable_mosaic.version = 11 : i64} {
  func.func @_gcn_layer_kernel(%arg0: i32, %arg1: i32, %arg2: memref<3x3xi32, #tpu.memory_space<smem>>, %arg3: memref<3xi32, #tpu.memory_space<smem>>, %arg4: memref<128x128xbf16, #tpu.memory_space<vmem>>, %arg5: memref<384x128xbf16, #tpu.memory_space<vmem>>, %arg6: memref<128x128xbf16, #tpu.memory_space<vmem>>, %arg7: memref<1x128xf32, #tpu.memory_space<vmem>>, %arg8: memref<128x128xbf16, #tpu.memory_space<vmem>>, %arg9: memref<128x128xf32, #tpu.memory_space<vmem>>) attributes {dimension_semantics = [#tpu.dimension_semantics<parallel>, #tpu.dimension_semantics<arbitrary>], iteration_bounds = array<i64: 3, 3>, scalar_prefetch = 2 : i64, scratch_operands = 1 : i64, tpu.core_type = #tpu.core_type<tc>, window_params = [{transform_indices = @transform_0, window_bounds = array<i64: 128, 128>}, {pipeline_mode = #tpu.pipeline_mode<synchronous>, transform_indices = @transform_1, window_bounds = array<i64: 384, 128>}, {pipeline_mode = #tpu.pipeline_mode<synchronous>, transform_indices = @transform_2, window_bounds = array<i64: 128, 128>}, {pipeline_mode = #tpu.pipeline_mode<synchronous>, transform_indices = @transform_3, window_bounds = array<i64: 1, 128>}, {transform_indices = @transform_4, window_bounds = array<i64: 128, 128>}]} {
    %c0_i32 = arith.constant 0 : i32
    %0 = arith.cmpi eq, %arg1, %c0_i32 : i32
    %1 = arith.extui %0 : i1 to i32
    %c0_i32_0 = arith.constant 0 : i32
    %2 = arith.cmpi ne, %1, %c0_i32_0 : i32
    scf.if %2 {
      %cst = arith.constant 0.000000e+00 : f32
      %11 = vector.broadcast %cst : f32 to vector<128x128xf32>
      %c0 = arith.constant 0 : index
      %c0_3 = arith.constant 0 : index
      %12 = vector.load %arg9[%c0, %c0_3] : memref<128x128xf32, #tpu.memory_space<vmem>>, vector<128x128xf32>
      tpu.vector_store %arg9[%c0, %c0_3], %11 {strides = array<i32>} : memref<128x128xf32, #tpu.memory_space<vmem>>, vector<128x128xf32>,
    } else {
    }
    %3 = arith.index_cast %arg0 : i32 to index
    %4 = memref.load %arg3[%3] : memref<3xi32, #tpu.memory_space<smem>>
    %5 = arith.cmpi slt, %arg1, %4 : i32
    %6 = arith.extui %5 : i1 to i32
    %c0_i32_1 = arith.constant 0 : i32
    %7 = arith.cmpi ne, %6, %c0_i32_1 : i32
    scf.if %7 {
      %11 = arith.index_cast %arg0 : i32 to index
      %12 = arith.index_cast %arg1 : i32 to index
      %13 = memref.load %arg2[%11, %12] : memref<3x3xi32, #tpu.memory_space<smem>>
      %c128_i32 = arith.constant 128 : i32
      %14 = arith.muli %13, %c128_i32 : i32
      %15 = tpu.assume_multiple %14, 128 : i32
      %c0 = arith.constant 0 : index
      %c0_3 = arith.constant 0 : index
      %16 = vector.load %arg9[%c0, %c0_3] : memref<128x128xf32, #tpu.memory_space<vmem>>, vector<128x128xf32>
      %c0_4 = arith.constant 0 : index
      %c0_5 = arith.constant 0 : index
      %17 = vector.load %arg4[%c0_4, %c0_5] : memref<128x128xbf16, #tpu.memory_space<vmem>>, vector<128x128xbf16>
      %18 = arith.index_cast %15 : i32 to index
      %c0_6 = arith.constant 0 : index
      %19 = vector.load %arg5[%18, %c0_6] : memref<384x128xbf16, #tpu.memory_space<vmem>>, vector<128x128xbf16>
      %cst = arith.constant dense<0.000000e+00> : vector<128x128xf32>
      %20 = tpu.matmul %17, %19, %cst {dimension_numbers = #tpu.dot_dimension_numbers<[1], [0], [0], [1], [0, 0, 1, 1], [], []>} : vector<128x128xbf16>, vector<128x128xbf16>, vector<128x128xf32> -> vector<128x128xf32>
      %21 = arith.addf %16, %20 : vector<128x128xf32>
      %c0_7 = arith.constant 0 : index
      %c0_8 = arith.constant 0 : index
      %22 = vector.load %arg9[%c0_7, %c0_8] : memref<128x128xf32, #tpu.memory_space<vmem>>, vector<128x128xf32>
      tpu.vector_store %arg9[%c0_7, %c0_8], %21 {strides = array<i32>} : memref<128x128xf32, #tpu.memory_space<vmem>>, vector<128x128xf32>,
    } else {
    }
    %c2_i32 = arith.constant 2 : i32
    %8 = arith.cmpi eq, %arg1, %c2_i32 : i32
    %9 = arith.extui %8 : i1 to i32
    %c0_i32_2 = arith.constant 0 : i32
    %10 = arith.cmpi ne, %9, %c0_i32_2 : i32
    scf.if %10 {
      %c0 = arith.constant 0 : index
      %c0_3 = arith.constant 0 : index
      %11 = vector.load %arg9[%c0, %c0_3] : memref<128x128xf32, #tpu.memory_space<vmem>>, vector<128x128xf32>
      %12 = arith.truncf %11 : vector<128x128xf32> to vector<128x128xbf16>
      %c0_4 = arith.constant 0 : index
      %c0_5 = arith.constant 0 : index
      %13 = vector.load %arg6[%c0_4, %c0_5] : memref<128x128xbf16, #tpu.memory_space<vmem>>, vector<128x128xbf16>
      %cst = arith.constant dense<0.000000e+00> : vector<128x128xf32>
      %14 = tpu.matmul %12, %13, %cst {dimension_numbers = #tpu.dot_dimension_numbers<[1], [0], [0], [1], [0, 0, 1, 1], [], []>} : vector<128x128xbf16>, vector<128x128xbf16>, vector<128x128xf32> -> vector<128x128xf32>
      %c0_6 = arith.constant 0 : index
      %c0_7 = arith.constant 0 : index
      %15 = vector.load %arg7[%c0_6, %c0_7] : memref<1x128xf32, #tpu.memory_space<vmem>>, vector<1x128xf32>
      %16 = vector.broadcast %15 : vector<1x128xf32> to vector<128x128xf32>
      %17 = arith.addf %14, %16 : vector<128x128xf32>
      %cst_8 = arith.constant 0.000000e+00 : f32
      %18 = vector.broadcast %cst_8 : f32 to vector<128x128xf32>
      %19 = arith.maximumf %17, %18 : vector<128x128xf32>
      %20 = arith.truncf %19 : vector<128x128xf32> to vector<128x128xbf16>
      %c0_9 = arith.constant 0 : index
      %c0_10 = arith.constant 0 : index
      %21 = vector.load %arg8[%c0_9, %c0_10] : memref<128x128xbf16, #tpu.memory_space<vmem>>, vector<128x128xbf16>
      tpu.vector_store %arg8[%c0_9, %c0_10], %20 {strides = array<i32>} : memref<128x128xbf16, #tpu.memory_space<vmem>>, vector<128x128xbf16>,
    } else {
    }
    return
  }
  func.func @transform_0(%arg0: i32, %arg1: i32, %arg2: memref<3x3xi32, #tpu.memory_space<smem>>, %arg3: memref<3xi32, #tpu.memory_space<smem>>) -> (i32, i32) {
    %0 = arith.index_cast %arg0 : i32 to index
    %1 = arith.index_cast %arg1 : i32 to index
    %2 = memref.load %arg2[%0, %1] : memref<3x3xi32, #tpu.memory_space<smem>>
    %c0_i32 = arith.constant 0 : i32
    return %arg0, %2 : i32, i32
  }
  func.func @transform_1(%arg0: i32, %arg1: i32, %arg2: memref<3x3xi32, #tpu.memory_space<smem>>, %arg3: memref<3xi32, #tpu.memory_space<smem>>) -> (i32, i32) {
    %c0_i32 = arith.constant 0 : i32
    %c0_i32_0 = arith.constant 0 : i32
    %c0_i32_1 = arith.constant 0 : i32
    return %c0_i32, %c0_i32_0 : i32, i32
  }
  func.func @transform_2(%arg0: i32, %arg1: i32, %arg2: memref<3x3xi32, #tpu.memory_space<smem>>, %arg3: memref<3xi32, #tpu.memory_space<smem>>) -> (i32, i32) {
    %c0_i32 = arith.constant 0 : i32
    %c0_i32_0 = arith.constant 0 : i32
    %c0_i32_1 = arith.constant 0 : i32
    return %c0_i32, %c0_i32_0 : i32, i32
  }
  func.func @transform_3(%arg0: i32, %arg1: i32, %arg2: memref<3x3xi32, #tpu.memory_space<smem>>, %arg3: memref<3xi32, #tpu.memory_space<smem>>) -> (i32, i32) {
    %c0_i32 = arith.constant 0 : i32
    %c0_i32_0 = arith.constant 0 : i32
    %c0_i32_1 = arith.constant 0 : i32
    return %c0_i32, %c0_i32_0 : i32, i32
  }
  func.func @transform_4(%arg0: i32, %arg1: i32, %arg2: memref<3x3xi32, #tpu.memory_space<smem>>, %arg3: memref<3xi32, #tpu.memory_space<smem>>) -> (i32, i32) {
    %c0_i32 = arith.constant 0 : i32
    %c0_i32_0 = arith.constant 0 : i32
    return %arg0, %c0_i32 : i32, i32
  }
}

</mosaic_0001>

<llo_original>
// kernel: tpu_custom_call.1
$region0: #{tpu_custom_call.1}
  #allocation0 [shape = 'u32[]', space=smem, size = 0x4, offset = 0x4, fixed_abs, tag = 'smem constant byte address 0x4 - core index']
  #allocation1 [shape = 'u32[144,128]{1,0:T(1,128)}', space=vmem, size = 0x12000, scoped, tag = 'internal scratch']
  #allocation2 [shape = 'f32[128,128]{1,0:T(8,128)}', space=vmem, size = 0x10000, scoped, tag = 'scratch operand']
  #allocation3 [shape = 's32[1]{0}', space=sflag, size = 0x4, scoped, tag = 'scoped memory for tpu_custom_call.1']
  #allocation4 [shape = 'u8[2048]{0}', space=smem, size = 0x800, scoped, tag = 'prefetched SMEM operand 0']
  #allocation5 [shape = 'u8[512]{0}', space=smem, size = 0x200, scoped, tag = 'prefetched SMEM operand 1']
  %s0 = inlined_call_operand.hbm [shape: s32[3,3], index: 0, kind: input, shape index: {}]
  %s1 = inlined_call_operand.vmem [shape: s32[3], index: 1, kind: input, shape index: {}]
  %s2 = inlined_call_operand.hbm [shape: bf16[384,384], index: 2, kind: input, shape index: {}]
  %s3 = inlined_call_operand.hbm [shape: bf16[384,128], index: 3, kind: input, shape index: {}]
  %s4 = inlined_call_operand.hbm [shape: bf16[128,128], index: 4, kind: input, shape index: {}]
  %s5 = inlined_call_operand.vmem [shape: f32[1,128], index: 5, kind: input, shape index: {}]
  %s6 = inlined_call_operand.hbm [shape: bf16[384,128], index: 6, kind: output, shape index: {}]
  %s7 = sld [smem:[#allocation0]]
  $region73: #{tpu_custom_call.1} parent=0
    _
  %s9 = ssub.s32 1, %s7
  %s10 = scalar_select 0, %s9, %s7
  %12 = dma.hbm_to_smem %s0, 64, [#allocation4], [#allocation3]
  %s13 = sshll.u32 %s1, 4
  %s14 = int_to_ptr.vmem [resolvable:$true] %s13
  %16 = dma.vmem_to_smem %s14, 16, [#allocation5], [#allocation3]
  %17 = dma.done [#allocation3], 80
  %18 = sfence
  $region1: #{tpu_custom_call.1} parent=0
    #allocation6 [shape = 'u8[65536]{0}', space=vmem, size = 0x10000, scoped, tag = 'input window, operand 2']
    #allocation7 [shape = 's32[2]{0}', space=sflag, size = 0x8, scoped, tag = 'scoped memory for tpu_custom_call.1']
    #allocation8 [shape = 's32[2]{0}', space=sflag, size = 0x8, scoped, tag = 'scoped memory for tpu_custom_call.1']
    #allocation9 [shape = 'u8[98304]{0}', space=vmem, size = 0x18000, scoped, tag = 'input window, operand 3, single buffered']
    #allocation10 [shape = 's32[1]{0}', space=sflag, size = 0x4, scoped, tag = 'scoped memory for tpu_custom_call.1']
    #allocation11 [shape = 'u8[32768]{0}', space=vmem, size = 0x8000, scoped, tag = 'input window, operand 4, single buffered']
    #allocation12 [shape = 'u8[65536]{0}', space=vmem, size = 0x10000, scoped, tag = 'output window, operand 0']
    %19 = vsyncpa [#allocation7], 0
    %s20 = scalar_lea.sflag [#allocation7], 1
    %21 = vsyncpa %s20, 0
    %22 = vsyncpa [#allocation10], 0
    %23 = vsyncpa [#allocation8], 0
    %s24 = scalar_lea.sflag [#allocation8], 1
    %25 = vsyncpa %s24, 0
    loop: start=0, step=1, limit=11
    $region2: #{tpu_custom_call.1} parent=1 // loop_pre_header
      _
    $region3: #{tpu_custom_call.1} parent=1 // loop_header
      %s27 = sphi 0, %s31
      %p28 = scmp.ge.s32.totalorder %s27, 11
      %s34 = sphi 0, %s46
      %s35 = sphi 0, %s42
      %s36 = sphi 0, %s34
      %s37 = sphi 0, %s35
      %s38 = sphi 0, %s36
      %s39 = sphi 0, %s37
      %s67 = sphi 0, %s69
      %s70 = sphi 0, %s67
      %s71 = sphi 0, %s70
      %s87 = sphi 0, %s71
      %s91 = sphi 0, %s91
      %s93 = sphi 0, %s91
      %s94 = sphi 0, %s93
      %s108 = sphi 0, %s94
      %s112 = sphi 0, %s112
      %s114 = sphi 0, %s112
      %s115 = sphi 0, %s114
      %s129 = sphi 0, %s115
      %s133 = sphi 0, %s133
      %s135 = sphi 0, %s133
      %s136 = sphi 0, %s135
      %s150 = sphi 0, %s136
      %s156 = sphi 0, %s158
      %s159 = sphi 0, %s156
      %s160 = sphi 0, %s159
      %s176 = sphi 0, %s160
    $region4: #{tpu_custom_call.1} parent=1 // loop_header_branch
      %30 = sbr.rel (%p28) target = $region8
    $region5: #{tpu_custom_call.1} parent=1 // loop_body
      %s32 = ssub.s32 %s27, 1
      %s33 = ssub.s32 %s27, 2
      %s40 = sadd.s32 1, %s35
      %p41 = scmp.ge.s32.totalorder %s40, 3
      %s42 = scalar_select %p41, 0, %s40
      %s43 = sadd.s32 1, %s34
      %s44 = scalar_select %p41, %s43, %s34
      %p45 = scmp.ge.s32.totalorder %s44, 3
      %s46 = scalar_select %p45, 0, %s44
      %s47 = sshra.s32 %s35, 7
      %s48 = sand.u32 %s35, 127
      %s49 = sadd.s32 %s47, %s34
      %s50 = smul.u32 %s49, 128
      %s51 = sshra.s32 %s35, 7
      %s52 = sand.u32 %s35, 127
      %s53 = sadd.s32 %s50, %s52
      %s54 = sld [smem:[#allocation4 + %s53]]
      %s55 = sshra.s32 %s42, 7
      %s56 = sand.u32 %s42, 127
      %s57 = sadd.s32 %s55, %s46
      %s58 = smul.u32 %s57, 128
      %s59 = sshra.s32 %s42, 7
      %s60 = sand.u32 %s42, 127
      %s61 = sadd.s32 %s58, %s60
      %s62 = sld [smem:[#allocation4 + %s61]]
      %s63 = ssub.s32 %s34, %s46
      %s64 = ssub.s32 %s54, %s62
      %s65 = sor.u32 %s63, %s64
      %p66 = scmp.eq.s32.totalorder %s65, 0
      %s68 = sadd.s32 %s67, 1
      %s69 = scalar_select %p66, %s67, %s68
      %p72 = pneg %p66
      %p73 = scmp.eq.s32.totalorder %s27, 8
      %p74 = por %p72, %p73
      %p75 = scmp.ne.s32.totalorder %s67, %s70
      %p76 = scmp.eq.s32.totalorder %s27, 0
      %p77 = por %p75, %p76
      %p78 = scmp.ne.s32.totalorder %s67, %s70
      %p79 = scmp.eq.s32.totalorder %s32, 8
      %p80 = por %p78, %p79
      %p81 = scmp.ne.s32.totalorder %s70, %s71
      %p82 = scmp.eq.s32.totalorder %s32, 0
      %p83 = por %p81, %p82
      %p84 = scmp.ne.s32.totalorder %s70, %s71
      %p85 = scmp.eq.s32.totalorder %s33, 8
      %p86 = por %p84, %p85
      %p88 = scmp.ne.s32.totalorder %s71, %s87
      %p89 = scmp.eq.s32.totalorder %s33, 0
      %p90 = por %p88, %p89
      %s92 = sadd.s32 %s91, 1
      %p95 = scmp.eq.s32.totalorder %s27, 8
      %p96 = scmp.ne.s32.totalorder %s91, %s93
      %p97 = scmp.eq.s32.totalorder %s27, 0
      %p98 = por %p96, %p97
      %p99 = scmp.ne.s32.totalorder %s91, %s93
      %p100 = scmp.eq.s32.totalorder %s32, 8
      %p101 = por %p99, %p100
      %p102 = scmp.ne.s32.totalorder %s93, %s94
      %p103 = scmp.eq.s32.totalorder %s32, 0
      %p104 = por %p102, %p103
      %p105 = scmp.ne.s32.totalorder %s93, %s94
      %p106 = scmp.eq.s32.totalorder %s33, 8
      %p107 = por %p105, %p106
      %p109 = scmp.ne.s32.totalorder %s94, %s108
      %p110 = scmp.eq.s32.totalorder %s33, 0
      %p111 = por %p109, %p110
      %s113 = sadd.s32 %s112, 1
      %p116 = scmp.eq.s32.totalorder %s27, 8
      %p117 = scmp.ne.s32.totalorder %s112, %s114
      %p118 = scmp.eq.s32.totalorder %s27, 0
      %p119 = por %p117, %p118
      %p120 = scmp.ne.s32.totalorder %s112, %s114
      %p121 = scmp.eq.s32.totalorder %s32, 8
      %p122 = por %p120, %p121
      %p123 = scmp.ne.s32.totalorder %s114, %s115
      %p124 = scmp.eq.s32.totalorder %s32, 0
      %p125 = por %p123, %p124
      %p126 = scmp.ne.s32.totalorder %s114, %s115
      %p127 = scmp.eq.s32.totalorder %s33, 8
      %p128 = por %p126, %p127
      %p130 = scmp.ne.s32.totalorder %s115, %s129
      %p131 = scmp.eq.s32.totalorder %s33, 0
      %p132 = por %p130, %p131
      %s134 = sadd.s32 %s133, 1
      %p137 = scmp.eq.s32.totalorder %s27, 8
      %p138 = scmp.ne.s32.totalorder %s133, %s135
      %p139 = scmp.eq.s32.totalorder %s27, 0
      %p140 = por %p138, %p139
      %p141 = scmp.ne.s32.totalorder %s133, %s135
      %p142 = scmp.eq.s32.totalorder %s32, 8
      %p143 = por %p141, %p142
      %p144 = scmp.ne.s32.totalorder %s135, %s136
      %p145 = scmp.eq.s32.totalorder %s32, 0
      %p146 = por %p144, %p145
      %p147 = scmp.ne.s32.totalorder %s135, %s136
      %p148 = scmp.eq.s32.totalorder %s33, 8
      %p149 = por %p147, %p148
      %p151 = scmp.ne.s32.totalorder %s136, %s150
      %p152 = scmp.eq.s32.totalorder %s33, 0
      %p153 = por %p151, %p152
      %s154 = ssub.s32 %s34, %s46
      %p155 = scmp.eq.s32.totalorder %s154, 0
      %s157 = sadd.s32 %s156, 1
      %s158 = scalar_select %p155, %s156, %s157
      %p161 = pneg %p155
      %p162 = scmp.eq.s32.totalorder %s27, 8
      %p163 = por %p161, %p162
      %p164 = scmp.ne.s32.totalorder %s156, %s159
      %p165 = scmp.eq.s32.totalorder %s27, 0
      %p166 = por %p164, %p165
      %p167 = scmp.ne.s32.totalorder %s156, %s159
      %p168 = scmp.eq.s32.totalorder %s32, 8
      %p169 = por %p167, %p168
      %p170 = scmp.ne.s32.totalorder %s159, %s160
      %p171 = scmp.eq.s32.totalorder %s32, 0
      %p172 = por %p170, %p171
      %p173 = scmp.ne.s32.totalorder %s159, %s160
      %p174 = scmp.eq.s32.totalorder %s33, 8
      %p175 = por %p173, %p174
      %p177 = scmp.ne.s32.totalorder %s160, %s176
      %p178 = scmp.eq.s32.totalorder %s33, 0
      %p179 = por %p177, %p178
      %p180 = scmp.le.s32.totalorder 1, %s27
      %p181 = scmp.lt.s32.totalorder %s27, 10
      %p182 = pnand %p180, %p181
      %p183 = pneg %p182
      // Predicated region
      $region9: #{tpu_custom_call.1} parent=5 // pred_check
        _
      $region10: #{tpu_custom_call.1} parent=5 // pred_check_branch
        %185 = sbr.rel (%p182) target = $region12
      $region11: #{tpu_custom_call.1} parent=5 // pred_region
        %s186 = ssub.s32 %s27, 1
        // Predicated region
        $region13: #{tpu_custom_call.1} parent=11 // pred_check
          %p187 = pneg %p104
        $region14: #{tpu_custom_call.1} parent=11 // pred_check_branch
          %189 = sbr.rel (%p187) target = $region16
        $region15: #{tpu_custom_call.1} parent=11 // pred_region
          %s191 = ssub.s32 3072, 3072
          %192 = vsyncadd [#allocation10], %s191
          %s193 = sshll.u32 [#allocation9], 4
          %s194 = int_to_ptr.vmem [resolvable:$true] %s193
          %199 = dma.hbm_to_vmem [thread:$0]  %s3, 3072, %s194, [#allocation10], 64, 64, 4
        $region16: #{tpu_custom_call.1} parent=11 // pred_fallthru
          _
        // Predicated region
        $region17: #{tpu_custom_call.1} parent=11 // pred_check
          %p200 = pneg %p125
        $region18: #{tpu_custom_call.1} parent=11 // pred_check_branch
          %202 = sbr.rel (%p200) target = $region20
        $region19: #{tpu_custom_call.1} parent=11 // pred_region
          %s204 = ssub.s32 1024, 1024
          %205 = vsyncadd [#allocation10], %s204
          %s206 = sshll.u32 [#allocation11], 4
          %s207 = int_to_ptr.vmem [resolvable:$true] %s206
          %212 = dma.hbm_to_vmem [thread:$0]  %s4, 1024, %s207, [#allocation10], 64, 64, 4
        $region20: #{tpu_custom_call.1} parent=11 // pred_fallthru
          _
        // Predicated region
        $region21: #{tpu_custom_call.1} parent=11 // pred_check
          %p213 = pneg %p146
        $region22: #{tpu_custom_call.1} parent=11 // pred_check_branch
          %215 = sbr.rel (%p213) target = $region24
        $region23: #{tpu_custom_call.1} parent=11 // pred_region
          _
        $region24: #{tpu_custom_call.1} parent=11 // pred_fallthru
          _
      $region12: #{tpu_custom_call.1} parent=5 // pred_fallthru
        _
      %p216 = scmp.lt.s32.totalorder %s27, 9
      // Predicated region
      $region25: #{tpu_custom_call.1} parent=5 // pred_check
        %p217 = pneg %p216
      $region26: #{tpu_custom_call.1} parent=5 // pred_check_branch
        %219 = sbr.rel (%p217) target = $region28
      $region27: #{tpu_custom_call.1} parent=5 // pred_region
        // Predicated region
        $region29: #{tpu_custom_call.1} parent=27 // pred_check
          %p220 = pneg %p77
        $region30: #{tpu_custom_call.1} parent=27 // pred_check_branch
          %222 = sbr.rel (%p220) target = $region32
        $region31: #{tpu_custom_call.1} parent=27 // pred_region
          %s223 = sand.u32 %s67, 1
          %s224 = scalar_lea.sflag [#allocation7], %s223
          %s225 = sand.u32 %s67, 1
          %s226 = smul.addr %s225, 64
          %s227 = scalar_lea.vmem [#allocation6], %s226
          %s228 = sshra.s32 %s35, 7
          %s229 = sand.u32 %s35, 127
          %s230 = sadd.s32 %s228, %s34
          %s231 = smul.u32 %s230, 128
          %s232 = sshra.s32 %s35, 7
          %s233 = sand.u32 %s35, 127
          %s234 = sadd.s32 %s231, %s233
          %s235 = sld [smem:[#allocation4 + %s234]]
          %s236 = smul.u32 16, %s34
          %s238 = ssub.s32 1024, 1024
          %239 = vsyncadd %s224, %s238
          %s240 = smul.addr %s236, 3
          %s241 = sadd.s32 %s235, %s240
          %s242 = smul.addr %s241, 64
          %s243 = scalar_lea.hbm %s2, %s242
          %s244 = sshll.u32 %s227, 4
          %s245 = int_to_ptr.vmem [resolvable:$true] %s244
          %250 = dma.hbm_to_vmem [thread:$0]  %s243, 1024, %s245, %s224, 192, 64, 4
        $region32: #{tpu_custom_call.1} parent=27 // pred_fallthru
          _
      $region28: #{tpu_custom_call.1} parent=5 // pred_fallthru
        _
      %p251 = scmp.le.s32.totalorder 1, %s27
      %p252 = scmp.lt.s32.totalorder %s27, 10
      %p253 = pnand %p251, %p252
      %p254 = pneg %p253
      // Predicated region
      $region33: #{tpu_custom_call.1} parent=5 // pred_check
        _
      $region34: #{tpu_custom_call.1} parent=5 // pred_check_branch
        %256 = sbr.rel (%p253) target = $region36
      $region35: #{tpu_custom_call.1} parent=5 // pred_region
        %s257 = ssub.s32 %s27, 1
        %s258 = sand.u32 %s70, 1
        %s259 = scalar_lea.sflag [#allocation7], %s258
        %s260 = sand.u32 %s70, 1
        %s261 = smul.addr %s260, 64
        %s262 = scalar_lea.vmem [#allocation6], %s261
        // Predicated region
        $region37: #{tpu_custom_call.1} parent=35 // pred_check
          %p263 = pneg %p83
        $region38: #{tpu_custom_call.1} parent=35 // pred_check_branch
          %265 = sbr.rel (%p263) target = $region40
        $region39: #{tpu_custom_call.1} parent=35 // pred_region
          %266 = dma.done %s259, 1024
        $region40: #{tpu_custom_call.1} parent=35 // pred_fallthru
          _
        // Predicated region
        $region41: #{tpu_custom_call.1} parent=35 // pred_check
          %p267 = pneg %p104
        $region42: #{tpu_custom_call.1} parent=35 // pred_check_branch
          %269 = sbr.rel (%p267) target = $region44
        $region43: #{tpu_custom_call.1} parent=35 // pred_region
          %270 = dma.done [#allocation10], 3072
        $region44: #{tpu_custom_call.1} parent=35 // pred_fallthru
          _
        // Predicated region
        $region45: #{tpu_custom_call.1} parent=35 // pred_check
          %p271 = pneg %p125
        $region46: #{tpu_custom_call.1} parent=35 // pred_check_branch
          %273 = sbr.rel (%p271) target = $region48
        $region47: #{tpu_custom_call.1} parent=35 // pred_region
          %274 = dma.done [#allocation10], 1024
        $region48: #{tpu_custom_call.1} parent=35 // pred_fallthru
          _
        %s275 = sand.u32 %s70, 1
        %s276 = scalar_lea.sflag [#allocation7], %s275
        %s277 = sand.u32 %s70, 1
        %s278 = smul.addr %s277, 64
        %s279 = scalar_lea.vmem [#allocation6], %s278
        %p280 = pneg %p83
        %p281 = pneg %p80
        %p282 = pneg %p104
        %p283 = pneg %p101
        %p284 = pneg %p125
        %p285 = pneg %p122
        %p286 = pneg %p146
        %p287 = pneg %p143
        %p288 = pneg %p172
        %p289 = pneg %p169
        %s290 = sand.u32 %s159, 1
        %s291 = scalar_lea.sflag [#allocation8], %s290
        %s292 = sand.u32 %s159, 1
        %s293 = smul.addr %s292, 64
        %s294 = scalar_lea.vmem [#allocation12], %s293
        %s295 = sshra.s32 %s37, 7
        %s296 = sand.u32 %s37, 127
        %s297 = sadd.s32 %s295, %s36
        %s298 = smul.u32 %s297, 128
        %s299 = sshra.s32 %s37, 7
        %s300 = sand.u32 %s37, 127
        %s301 = sadd.s32 %s298, %s300
        %s302 = sld [smem:[#allocation4 + %s301]]
        %s303 = smul.u32 16, %s36
        %s304 = smul.u32 16, %s36
        %p306 = scmp.eq.s32.totalorder %s37, 0
        // Predicated region
        $region49: #{tpu_custom_call.1} parent=35 // pred_check
          %p307 = pneg %p306
        $region50: #{tpu_custom_call.1} parent=35 // pred_check_branch
          %309 = sbr.rel (%p307) target = $region52
        $region51: #{tpu_custom_call.1} parent=35 // pred_region
          %310 = vst [vmem:[#allocation2] sm:$0xff] 0.0
          %311 = vst [vmem:[#allocation2 + $0x8] sm:$0xff] 0.0
          %312 = vst [vmem:[#allocation2 + $0x10] sm:$0xff] 0.0
          %313 = vst [vmem:[#allocation2 + $0x18] sm:$0xff] 0.0
          %314 = vst [vmem:[#allocation2 + $0x20] sm:$0xff] 0.0
          %315 = vst [vmem:[#allocation2 + $0x28] sm:$0xff] 0.0
          %316 = vst [vmem:[#allocation2 + $0x30] sm:$0xff] 0.0
          %317 = vst [vmem:[#allocation2 + $0x38] sm:$0xff] 0.0
          %318 = vst [vmem:[#allocation2 + $0x40] sm:$0xff] 0.0
          %319 = vst [vmem:[#allocation2 + $0x48] sm:$0xff] 0.0
          %320 = vst [vmem:[#allocation2 + $0x50] sm:$0xff] 0.0
          %321 = vst [vmem:[#allocation2 + $0x58] sm:$0xff] 0.0
          %322 = vst [vmem:[#allocation2 + $0x60] sm:$0xff] 0.0
          %323 = vst [vmem:[#allocation2 + $0x68] sm:$0xff] 0.0
          %324 = vst [vmem:[#allocation2 + $0x70] sm:$0xff] 0.0
          %325 = vst [vmem:[#allocation2 + $0x78] sm:$0xff] 0.0
        $region52: #{tpu_custom_call.1} parent=35 // pred_fallthru
          _
        %s326 = sld [smem:[#allocation5 + %s36]]
        %p327 = scmp.lt.s32.totalorder %s37, %s326
        // Predicated region
        $region53: #{tpu_custom_call.1} parent=35 // pred_check
          %p328 = pneg %p327
        $region54: #{tpu_custom_call.1} parent=35 // pred_check_branch
          %330 = sbr.rel (%p328) target = $region56
        $region55: #{tpu_custom_call.1} parent=35 // pred_region
          %s331 = sshra.s32 %s37, 7
          %s332 = sand.u32 %s37, 127
          %s333 = sadd.s32 %s331, %s36
          %s334 = smul.u32 %s333, 128
          %s335 = sshra.s32 %s37, 7
          %s336 = sand.u32 %s37, 127
          %s337 = sadd.s32 %s334, %s336
          %s338 = sld [smem:[#allocation4 + %s337]]
          %s339 = smul.u32 %s338, 128
          %v340 = vld [vmem:[#allocation2] sm:$0xff]
          %v341 = vld [vmem:[#allocation2 + $0x8] sm:$0xff]
          %v342 = vld [vmem:[#allocation2 + $0x10] sm:$0xff]
          %v343 = vld [vmem:[#allocation2 + $0x18] sm:$0xff]
          %v344 = vld [vmem:[#allocation2 + $0x20] sm:$0xff]
          %v345 = vld [vmem:[#allocation2 + $0x28] sm:$0xff]
          %v346 = vld [vmem:[#allocation2 + $0x30] sm:$0xff]
          %v347 = vld [vmem:[#allocation2 + $0x38] sm:$0xff]
          %v348 = vld [vmem:[#allocation2 + $0x40] sm:$0xff]
          %v349 = vld [vmem:[#allocation2 + $0x48] sm:$0xff]
          %v350 = vld [vmem:[#allocation2 + $0x50] sm:$0xff]
          %v351 = vld [vmem:[#allocation2 + $0x58] sm:$0xff]
          %v352 = vld [vmem:[#allocation2 + $0x60] sm:$0xff]
          %v353 = vld [vmem:[#allocation2 + $0x68] sm:$0xff]
          %v354 = vld [vmem:[#allocation2 + $0x70] sm:$0xff]
          %v355 = vld [vmem:[#allocation2 + $0x78] sm:$0xff]
          %v356 = vld [vmem:[%s262] sm:$0xf]
          %v357 = vld [vmem:[%s262 + $0x4] sm:$0xf]
          %v358 = vld [vmem:[%s262 + $0x8] sm:$0xf]
          %v359 = vld [vmem:[%s262 + $0xc] sm:$0xf]
          %v360 = vld [vmem:[%s262 + $0x10] sm:$0xf]
          %v361 = vld [vmem:[%s262 + $0x14] sm:$0xf]
          %v362 = vld [vmem:[%s262 + $0x18] sm:$0xf]
          %v363 = vld [vmem:[%s262 + $0x1c] sm:$0xf]
          %v364 = vld [vmem:[%s262 + $0x20] sm:$0xf]
          %v365 = vld [vmem:[%s262 + $0x24] sm:$0xf]
          %v366 = vld [vmem:[%s262 + $0x28] sm:$0xf]
          %v367 = vld [vmem:[%s262 + $0x2c] sm:$0xf]
          %v368 = vld [vmem:[%s262 + $0x30] sm:$0xf]
          %v369 = vld [vmem:[%s262 + $0x34] sm:$0xf]
          %v370 = vld [vmem:[%s262 + $0x38] sm:$0xf]
          %v371 = vld [vmem:[%s262 + $0x3c] sm:$0xf]
          %s372 = sshra.s32 %s339, 3
          %s373 = sand.u32 %s339, 7
          %s374 = smul.addr %s372, 4
          %s375 = scalar_lea.vmem [#allocation9], %s374
          %v376 = vld [vmem:[%s375] sm:$0xf]
          %v377 = vld [vmem:[%s375 + $0x4] sm:$0xf]
          %v378 = vld [vmem:[%s375 + $0x8] sm:$0xf]
          %v379 = vld [vmem:[%s375 + $0xc] sm:$0xf]
          %v380 = vld [vmem:[%s375 + $0x10] sm:$0xf]
          %v381 = vld [vmem:[%s375 + $0x14] sm:$0xf]
          %v382 = vld [vmem:[%s375 + $0x18] sm:$0xf]
          %v383 = vld [vmem:[%s375 + $0x1c] sm:$0xf]
          %v384 = vld [vmem:[%s375 + $0x20] sm:$0xf]
          %v385 = vld [vmem:[%s375 + $0x24] sm:$0xf]
          %v386 = vld [vmem:[%s375 + $0x28] sm:$0xf]
          %v387 = vld [vmem:[%s375 + $0x2c] sm:$0xf]
          %v388 = vld [vmem:[%s375 + $0x30] sm:$0xf]
          %v389 = vld [vmem:[%s375 + $0x34] sm:$0xf]
          %v390 = vld [vmem:[%s375 + $0x38] sm:$0xf]
          %v391 = vld [vmem:[%s375 + $0x3c] sm:$0xf]
          %v408 = vunpack.c.l.b16 %v356
          %v409 = vunpack.c.l.b16 %v357
          %v410 = vunpack.c.l.b16 %v358
          %v411 = vunpack.c.l.b16 %v359
          %v412 = vunpack.c.l.b16 %v360
          %v413 = vunpack.c.l.b16 %v361
          %v414 = vunpack.c.l.b16 %v362
          %v415 = vunpack.c.l.b16 %v363
          %v416 = vunpack.c.l.b16 %v364
          %v417 = vunpack.c.l.b16 %v365
          %v418 = vunpack.c.l.b16 %v366
          %v419 = vunpack.c.l.b16 %v367
          %v420 = vunpack.c.l.b16 %v368
          %v421 = vunpack.c.l.b16 %v369
          %v422 = vunpack.c.l.b16 %v370
          %v423 = vunpack.c.l.b16 %v371
          %v424 = vpack.c.b16 %v409, %v408
          %v425 = vpack.c.b16 %v411, %v410
          %v426 = vpack.c.b16 %v413, %v412
          %v427 = vpack.c.b16 %v415, %v414
          %v428 = vpack.c.b16 %v417, %v416
          %v429 = vpack.c.b16 %v419, %v418
          %v430 = vpack.c.b16 %v421, %v420
          %v431 = vpack.c.b16 %v423, %v422
          %v456 = vunpack.c.l.b16 %v376
          %v457 = vunpack.c.l.b16 %v377
          %v458 = vunpack.c.l.b16 %v378
          %v459 = vunpack.c.l.b16 %v379
          %v460 = vunpack.c.l.b16 %v380
          %v461 = vunpack.c.l.b16 %v381
          %v462 = vunpack.c.l.b16 %v382
          %v463 = vunpack.c.l.b16 %v383
          %v464 = vunpack.c.l.b16 %v384
          %v465 = vunpack.c.l.b16 %v385
          %v466 = vunpack.c.l.b16 %v386
          %v467 = vunpack.c.l.b16 %v387
          %v468 = vunpack.c.l.b16 %v388
          %v469 = vunpack.c.l.b16 %v389
          %v470 = vunpack.c.l.b16 %v390
          %v471 = vunpack.c.l.b16 %v391
          %v472 = vpack.c.b16 %v457, %v456
          %v473 = vpack.c.b16 %v459, %v458
          %v474 = vpack.c.b16 %v461, %v460
          %v475 = vpack.c.b16 %v463, %v462
          %v476 = vpack.c.b16 %v465, %v464
          %v477 = vpack.c.b16 %v467, %v466
          %v478 = vpack.c.b16 %v469, %v468
          %v479 = vpack.c.b16 %v471, %v470
          %488 = vmatprep.subr.bf16.mxu0 0
          %489 = vmatpush1.bf16.msra.mxu0 %v472
          %490 = vmatprep.subr.bf16.mxu0 0
          %491 = vmatpush1.bf16.msra.mxu0 %v473
          %492 = vmatprep.subr.bf16.mxu0 0
          %493 = vmatpush1.bf16.msra.mxu0 %v474
          %494 = vmatprep.subr.bf16.mxu0 0
          %495 = vmatpush1.bf16.msra.mxu0 %v475
          %496 = vmatprep.subr.bf16.mxu0 0
          %497 = vmatpush1.bf16.msra.mxu0 %v476
          %498 = vmatprep.subr.bf16.mxu0 0
          %499 = vmatpush1.bf16.msra.mxu0 %v477
          %500 = vmatprep.subr.bf16.mxu0 0
          %501 = vmatpush1.bf16.msra.mxu0 %v478
          %502 = vmatprep.subr.bf16.mxu0 0
          %503 = vmatpush1.bf16.msra.mxu0 %v479
          %504 = vmatprep.subr.bf16.mxu0 0
          %505 = vmatpush1.bf16.msra.mxu0 0
          %506 = vmatprep.subr.bf16.mxu0 0
          %507 = vmatpush1.bf16.msra.mxu0 0
          %508 = vmatprep.subr.bf16.mxu0 0
          %509 = vmatpush1.bf16.msra.mxu0 0
          %510 = vmatprep.subr.bf16.mxu0 0
          %511 = vmatpush1.bf16.msra.mxu0 0
          %512 = vmatprep.subr.bf16.mxu0 0
          %513 = vmatpush1.bf16.msra.mxu0 0
          %514 = vmatprep.subr.bf16.mxu0 0
          %515 = vmatpush1.bf16.msra.mxu0 0
          %516 = vmatprep.subr.bf16.mxu0 0
          %517 = vmatpush1.bf16.msra.mxu0 0
          %518 = vmatprep.subr.bf16.mxu0 0
          %519 = vmatpush1.bf16.msra.mxu0 0
          %520 = vmatprep.mubr.bf16.mxu0 0
          %521 = vmatmul.mubr.bf16.gmra.mrb[0].mxu0 %v424
          %v522 = vpop.f32.mrb[0].mxu0
          %v523 = vadd.f32 0.0, %v522
          %v524 = vpop.f32.mrb[0].mxu0
          %v525 = vpop.f32.mrb[0].mxu0
          %v526 = vadd.f32 0.0, %v525
          %v527 = vpop.f32.mrb[0].mxu0
          %528 = vmatprep.mubr.bf16.mxu0 0
          %529 = vmatmul.mubr.bf16.gmra.mrb[0].mxu0 %v425
          %v530 = vpop.f32.mrb[0].mxu0
          %v531 = vadd.f32 0.0, %v530
          %v532 = vpop.f32.mrb[0].mxu0
          %v533 = vpop.f32.mrb[0].mxu0
          %v534 = vadd.f32 0.0, %v533
          %v535 = vpop.f32.mrb[0].mxu0
          %536 = vmatprep.mubr.bf16.mxu0 0
          %537 = vmatmul.mubr.bf16.gmra.mrb[0].mxu0 %v426
          %v538 = vpop.f32.mrb[0].mxu0
          %v539 = vadd.f32 0.0, %v538
          %v540 = vpop.f32.mrb[0].mxu0
          %v541 = vpop.f32.mrb[0].mxu0
          %v542 = vadd.f32 0.0, %v541
          %v543 = vpop.f32.mrb[0].mxu0
          %544 = vmatprep.mubr.bf16.mxu0 0
          %545 = vmatmul.mubr.bf16.gmra.mrb[0].mxu0 %v427
          %v546 = vpop.f32.mrb[0].mxu0
          %v547 = vadd.f32 0.0, %v546
          %v548 = vpop.f32.mrb[0].mxu0
          %v549 = vpop.f32.mrb[0].mxu0
          %v550 = vadd.f32 0.0, %v549
          %v551 = vpop.f32.mrb[0].mxu0
          %552 = vmatprep.mubr.bf16.mxu0 0
          %553 = vmatmul.mubr.bf16.gmra.mrb[0].mxu0 %v428
          %v554 = vpop.f32.mrb[0].mxu0
          %v555 = vadd.f32 0.0, %v554
          %v556 = vpop.f32.mrb[0].mxu0
          %v557 = vpop.f32.mrb[0].mxu0
          %v558 = vadd.f32 0.0, %v557
          %v559 = vpop.f32.mrb[0].mxu0
          %560 = vmatprep.mubr.bf16.mxu0 0
          %561 = vmatmul.mubr.bf16.gmra.mrb[0].mxu0 %v429
          %v562 = vpop.f32.mrb[0].mxu0
          %v563 = vadd.f32 0.0, %v562
          %v564 = vpop.f32.mrb[0].mxu0
          %v565 = vpop.f32.mrb[0].mxu0
          %v566 = vadd.f32 0.0, %v565
          %v567 = vpop.f32.mrb[0].mxu0
          %568 = vmatprep.mubr.bf16.mxu0 0
          %569 = vmatmul.mubr.bf16.gmra.mrb[0].mxu0 %v430
          %v570 = vpop.f32.mrb[0].mxu0
          %v571 = vadd.f32 0.0, %v570
          %v572 = vpop.f32.mrb[0].mxu0
          %v573 = vpop.f32.mrb[0].mxu0
          %v574 = vadd.f32 0.0, %v573
          %v575 = vpop.f32.mrb[0].mxu0
          %576 = vmatprep.mubr.bf16.mxu0 0
          %577 = vmatmul.mubr.bf16.gmra.mrb[0].mxu0 %v431
          %v578 = vpop.f32.mrb[0].mxu0
          %v579 = vadd.f32 0.0, %v578
          %v580 = vpop.f32.mrb[0].mxu0
          %v581 = vpop.f32.mrb[0].mxu0
          %v582 = vadd.f32 0.0, %v581
          %v583 = vpop.f32.mrb[0].mxu0
          %584 = vdwg.mxu0
          %v585 = vadd.f32 %v340, %v523
          %v586 = vadd.f32 %v341, %v526
          %v587 = vadd.f32 %v342, %v531
          %v588 = vadd.f32 %v343, %v534
          %v589 = vadd.f32 %v344, %v539
          %v590 = vadd.f32 %v345, %v542
          %v591 = vadd.f32 %v346, %v547
          %v592 = vadd.f32 %v347, %v550
          %v593 = vadd.f32 %v348, %v555
          %v594 = vadd.f32 %v349, %v558
          %v595 = vadd.f32 %v350, %v563
          %v596 = vadd.f32 %v351, %v566
          %v597 = vadd.f32 %v352, %v571
          %v598 = vadd.f32 %v353, %v574
          %v599 = vadd.f32 %v354, %v579
          %v600 = vadd.f32 %v355, %v582
          %601 = vst [vmem:[#allocation2] sm:$0xff] %v585
          %602 = vst [vmem:[#allocation2 + $0x8] sm:$0xff] %v586
          %603 = vst [vmem:[#allocation2 + $0x10] sm:$0xff] %v587
          %604 = vst [vmem:[#allocation2 + $0x18] sm:$0xff] %v588
          %605 = vst [vmem:[#allocation2 + $0x20] sm:$0xff] %v589
          %606 = vst [vmem:[#allocation2 + $0x28] sm:$0xff] %v590
          %607 = vst [vmem:[#allocation2 + $0x30] sm:$0xff] %v591
          %608 = vst [vmem:[#allocation2 + $0x38] sm:$0xff] %v592
          %609 = vst [vmem:[#allocation2 + $0x40] sm:$0xff] %v593
          %610 = vst [vmem:[#allocation2 + $0x48] sm:$0xff] %v594
          %611 = vst [vmem:[#allocation2 + $0x50] sm:$0xff] %v595
          %612 = vst [vmem:[#allocation2 + $0x58] sm:$0xff] %v596
          %613 = vst [vmem:[#allocation2 + $0x60] sm:$0xff] %v597
          %614 = vst [vmem:[#allocation2 + $0x68] sm:$0xff] %v598
          %615 = vst [vmem:[#allocation2 + $0x70] sm:$0xff] %v599
          %616 = vst [vmem:[#allocation2 + $0x78] sm:$0xff] %v600
        $region56: #{tpu_custom_call.1} parent=35 // pred_fallthru
          _
        %p617 = scmp.eq.s32.totalorder %s37, 2
        // Predicated region
        $region57: #{tpu_custom_call.1} parent=35 // pred_check
          %p618 = pneg %p617
        $region58: #{tpu_custom_call.1} parent=35 // pred_check_branch
          %620 = sbr.rel (%p618) target = $region60
        $region59: #{tpu_custom_call.1} parent=35 // pred_region
          %v621 = vld [vmem:[#allocation2] sm:$0xff]
          %v622 = vld [vmem:[#allocation2 + $0x8] sm:$0xff]
          %v623 = vld [vmem:[#allocation2 + $0x10] sm:$0xff]
          %v624 = vld [vmem:[#allocation2 + $0x18] sm:$0xff]
          %v625 = vld [vmem:[#allocation2 + $0x20] sm:$0xff]
          %v626 = vld [vmem:[#allocation2 + $0x28] sm:$0xff]
          %v627 = vld [vmem:[#allocation2 + $0x30] sm:$0xff]
          %v628 = vld [vmem:[#allocation2 + $0x38] sm:$0xff]
          %v629 = vld [vmem:[#allocation2 + $0x40] sm:$0xff]
          %v630 = vld [vmem:[#allocation2 + $0x48] sm:$0xff]
          %v631 = vld [vmem:[#allocation2 + $0x50] sm:$0xff]
          %v632 = vld [vmem:[#allocation2 + $0x58] sm:$0xff]
          %v633 = vld [vmem:[#allocation2 + $0x60] sm:$0xff]
          %v634 = vld [vmem:[#allocation2 + $0x68] sm:$0xff]
          %v635 = vld [vmem:[#allocation2 + $0x70] sm:$0xff]
          %v636 = vld [vmem:[#allocation2 + $0x78] sm:$0xff]
          %v637 = vpack.c.bf16 %v622, %v621
          %v638 = vpack.c.bf16 %v624, %v623
          %v639 = vpack.c.bf16 %v626, %v625
          %v640 = vpack.c.bf16 %v628, %v627
          %v641 = vpack.c.bf16 %v630, %v629
          %v642 = vpack.c.bf16 %v632, %v631
          %v643 = vpack.c.bf16 %v634, %v633
          %v644 = vpack.c.bf16 %v636, %v635
          %v645 = vld [vmem:[#allocation11] sm:$0xf]
          %v646 = vld [vmem:[#allocation11 + $0x4] sm:$0xf]
          %v647 = vld [vmem:[#allocation11 + $0x8] sm:$0xf]
          %v648 = vld [vmem:[#allocation11 + $0xc] sm:$0xf]
          %v649 = vld [vmem:[#allocation11 + $0x10] sm:$0xf]
          %v650 = vld [vmem:[#allocation11 + $0x14] sm:$0xf]
          %v651 = vld [vmem:[#allocation11 + $0x18] sm:$0xf]
          %v652 = vld [vmem:[#allocation11 + $0x1c] sm:$0xf]
          %v653 = vld [vmem:[#allocation11 + $0x20] sm:$0xf]
          %v654 = vld [vmem:[#allocation11 + $0x24] sm:$0xf]
          %v655 = vld [vmem:[#allocation11 + $0x28] sm:$0xf]
          %v656 = vld [vmem:[#allocation11 + $0x2c] sm:$0xf]
          %v657 = vld [vmem:[#allocation11 + $0x30] sm:$0xf]
          %v658 = vld [vmem:[#allocation11 + $0x34] sm:$0xf]
          %v659 = vld [vmem:[#allocation11 + $0x38] sm:$0xf]
          %v660 = vld [vmem:[#allocation11 + $0x3c] sm:$0xf]
          %v661 = vld [vmem:[%s5] sm:$0x1]
          %v663 = vlaneseq
          %v664 = vshrl.u32 %v663, 7
          %v665 = vsub.s32 0, %v664
          %v666 = vrot.slane %v661, %v665
          %v684 = vunpack.c.l.b16 %v645
          %v685 = vunpack.c.l.b16 %v646
          %v686 = vunpack.c.l.b16 %v647
          %v687 = vunpack.c.l.b16 %v648
          %v688 = vunpack.c.l.b16 %v649
          %v689 = vunpack.c.l.b16 %v650
          %v690 = vunpack.c.l.b16 %v651
          %v691 = vunpack.c.l.b16 %v652
          %v692 = vunpack.c.l.b16 %v653
          %v693 = vunpack.c.l.b16 %v654
          %v694 = vunpack.c.l.b16 %v655
          %v695 = vunpack.c.l.b16 %v656
          %v696 = vunpack.c.l.b16 %v657
          %v697 = vunpack.c.l.b16 %v658
          %v698 = vunpack.c.l.b16 %v659
          %v699 = vunpack.c.l.b16 %v660
          %v700 = vpack.c.b16 %v685, %v684
          %v701 = vpack.c.b16 %v687, %v686
          %v702 = vpack.c.b16 %v689, %v688
          %v703 = vpack.c.b16 %v691, %v690
          %v704 = vpack.c.b16 %v693, %v692
          %v705 = vpack.c.b16 %v695, %v694
          %v706 = vpack.c.b16 %v697, %v696
          %v707 = vpack.c.b16 %v699, %v698
          %716 = vmatprep.subr.bf16.mxu0 0
          %717 = vmatpush1.bf16.msra.mxu0 %v700
          %718 = vmatprep.subr.bf16.mxu0 0
          %719 = vmatpush1.bf16.msra.mxu0 %v701
          %720 = vmatprep.subr.bf16.mxu0 0
          %721 = vmatpush1.bf16.msra.mxu0 %v702
          %722 = vmatprep.subr.bf16.mxu0 0
          %723 = vmatpush1.bf16.msra.mxu0 %v703
          %724 = vmatprep.subr.bf16.mxu0 0
          %725 = vmatpush1.bf16.msra.mxu0 %v704
          %726 = vmatprep.subr.bf16.mxu0 0
          %727 = vmatpush1.bf16.msra.mxu0 %v705
          %728 = vmatprep.subr.bf16.mxu0 0
          %729 = vmatpush1.bf16.msra.mxu0 %v706
          %730 = vmatprep.subr.bf16.mxu0 0
          %731 = vmatpush1.bf16.msra.mxu0 %v707
          %732 = vmatprep.subr.bf16.mxu0 0
          %733 = vmatpush1.bf16.msra.mxu0 0
          %734 = vmatprep.subr.bf16.mxu0 0
          %735 = vmatpush1.bf16.msra.mxu0 0
          %736 = vmatprep.subr.bf16.mxu0 0
          %737 = vmatpush1.bf16.msra.mxu0 0
          %738 = vmatprep.subr.bf16.mxu0 0
          %739 = vmatpush1.bf16.msra.mxu0 0
          %740 = vmatprep.subr.bf16.mxu0 0
          %741 = vmatpush1.bf16.msra.mxu0 0
          %742 = vmatprep.subr.bf16.mxu0 0
          %743 = vmatpush1.bf16.msra.mxu0 0
          %744 = vmatprep.subr.bf16.mxu0 0
          %745 = vmatpush1.bf16.msra.mxu0 0
          %746 = vmatprep.subr.bf16.mxu0 0
          %747 = vmatpush1.bf16.msra.mxu0 0
          %748 = vmatprep.mubr.bf16.mxu0 0
          %749 = vmatmul.mubr.bf16.gmra.mrb[0].mxu0 %v637
          %v750 = vpop.f32.mrb[0].mxu0
          %v751 = vadd.f32 %v666, %v750
          %v752 = vpop.f32.mrb[0].mxu0
          %v753 = vpop.f32.mrb[0].mxu0
          %v754 = vadd.f32 %v666, %v753
          %v755 = vpop.f32.mrb[0].mxu0
          %756 = vmatprep.mubr.bf16.mxu0 0
          %757 = vmatmul.mubr.bf16.gmra.mrb[0].mxu0 %v638
          %v758 = vpop.f32.mrb[0].mxu0
          %v759 = vadd.f32 %v666, %v758
          %v760 = vpop.f32.mrb[0].mxu0
          %v761 = vpop.f32.mrb[0].mxu0
          %v762 = vadd.f32 %v666, %v761
          %v763 = vpop.f32.mrb[0].mxu0
          %764 = vmatprep.mubr.bf16.mxu0 0
          %765 = vmatmul.mubr.bf16.gmra.mrb[0].mxu0 %v639
          %v766 = vpop.f32.mrb[0].mxu0
          %v767 = vadd.f32 %v666, %v766
          %v768 = vpop.f32.mrb[0].mxu0
          %v769 = vpop.f32.mrb[0].mxu0
          %v770 = vadd.f32 %v666, %v769
          %v771 = vpop.f32.mrb[0].mxu0
          %772 = vmatprep.mubr.bf16.mxu0 0
          %773 = vmatmul.mubr.bf16.gmra.mrb[0].mxu0 %v640
          %v774 = vpop.f32.mrb[0].mxu0
          %v775 = vadd.f32 %v666, %v774
          %v776 = vpop.f32.mrb[0].mxu0
          %v777 = vpop.f32.mrb[0].mxu0
          %v778 = vadd.f32 %v666, %v777
          %v779 = vpop.f32.mrb[0].mxu0
          %780 = vmatprep.mubr.bf16.mxu0 0
          %781 = vmatmul.mubr.bf16.gmra.mrb[0].mxu0 %v641
          %v782 = vpop.f32.mrb[0].mxu0
          %v783 = vadd.f32 %v666, %v782
          %v784 = vpop.f32.mrb[0].mxu0
          %v785 = vpop.f32.mrb[0].mxu0
          %v786 = vadd.f32 %v666, %v785
          %v787 = vpop.f32.mrb[0].mxu0
          %788 = vmatprep.mubr.bf16.mxu0 0
          %789 = vmatmul.mubr.bf16.gmra.mrb[0].mxu0 %v642
          %v790 = vpop.f32.mrb[0].mxu0
          %v791 = vadd.f32 %v666, %v790
          %v792 = vpop.f32.mrb[0].mxu0
          %v793 = vpop.f32.mrb[0].mxu0
          %v794 = vadd.f32 %v666, %v793
          %v795 = vpop.f32.mrb[0].mxu0
          %796 = vmatprep.mubr.bf16.mxu0 0
          %797 = vmatmul.mubr.bf16.gmra.mrb[0].mxu0 %v643
          %v798 = vpop.f32.mrb[0].mxu0
          %v799 = vadd.f32 %v666, %v798
          %v800 = vpop.f32.mrb[0].mxu0
          %v801 = vpop.f32.mrb[0].mxu0
          %v802 = vadd.f32 %v666, %v801
          %v803 = vpop.f32.mrb[0].mxu0
          %804 = vmatprep.mubr.bf16.mxu0 0
          %805 = vmatmul.mubr.bf16.gmra.mrb[0].mxu0 %v644
          %v806 = vpop.f32.mrb[0].mxu0
          %v807 = vadd.f32 %v666, %v806
          %v808 = vpop.f32.mrb[0].mxu0
          %v809 = vpop.f32.mrb[0].mxu0
          %v810 = vadd.f32 %v666, %v809
          %v811 = vpop.f32.mrb[0].mxu0
          %812 = vdwg.mxu0
          %v813 = vmax.f32 %v751, 0.0
          %v814 = vmax.f32 %v754, 0.0
          %v815 = vmax.f32 %v759, 0.0
          %v816 = vmax.f32 %v762, 0.0
          %v817 = vmax.f32 %v767, 0.0
          %v818 = vmax.f32 %v770, 0.0
          %v819 = vmax.f32 %v775, 0.0
          %v820 = vmax.f32 %v778, 0.0
          %v821 = vmax.f32 %v783, 0.0
          %v822 = vmax.f32 %v786, 0.0
          %v823 = vmax.f32 %v791, 0.0
          %v824 = vmax.f32 %v794, 0.0
          %v825 = vmax.f32 %v799, 0.0
          %v826 = vmax.f32 %v802, 0.0
          %v827 = vmax.f32 %v807, 0.0
          %v828 = vmax.f32 %v810, 0.0
          %v829 = vpack.c.bf16 %v814, %v813
          %v830 = vpack.c.bf16 %v816, %v815
          %v831 = vpack.c.bf16 %v818, %v817
          %v832 = vpack.c.bf16 %v820, %v819
          %v833 = vpack.c.bf16 %v822, %v821
          %v834 = vpack.c.bf16 %v824, %v823
          %v835 = vpack.c.bf16 %v826, %v825
          %v836 = vpack.c.bf16 %v828, %v827
          %v845 = vunpack.c.l.b16 %v829
          %v846 = vunpack.c.h.b16 %v829
          %v847 = vunpack.c.l.b16 %v830
          %v848 = vunpack.c.h.b16 %v830
          %v849 = vunpack.c.l.b16 %v831
          %v850 = vunpack.c.h.b16 %v831
          %v851 = vunpack.c.l.b16 %v832
          %v852 = vunpack.c.h.b16 %v832
          %v853 = vunpack.c.l.b16 %v833
          %v854 = vunpack.c.h.b16 %v833
          %v855 = vunpack.c.l.b16 %v834
          %v856 = vunpack.c.h.b16 %v834
          %v857 = vunpack.c.l.b16 %v835
          %v858 = vunpack.c.h.b16 %v835
          %v859 = vunpack.c.l.b16 %v836
          %v860 = vunpack.c.h.b16 %v836
          %v861 = vpack.c.b16 %v845, %v845
          %v862 = vpack.c.b16 %v846, %v846
          %v863 = vpack.c.b16 %v847, %v847
          %v864 = vpack.c.b16 %v848, %v848
          %v865 = vpack.c.b16 %v849, %v849
          %v866 = vpack.c.b16 %v850, %v850
          %v867 = vpack.c.b16 %v851, %v851
          %v868 = vpack.c.b16 %v852, %v852
          %v869 = vpack.c.b16 %v853, %v853
          %v870 = vpack.c.b16 %v854, %v854
          %v871 = vpack.c.b16 %v855, %v855
          %v872 = vpack.c.b16 %v856, %v856
          %v873 = vpack.c.b16 %v857, %v857
          %v874 = vpack.c.b16 %v858, %v858
          %v875 = vpack.c.b16 %v859, %v859
          %v876 = vpack.c.b16 %v860, %v860
          %893 = vst [vmem:[%s294] sm:$0xf] %v861
          %894 = vst [vmem:[%s294 + $0x4] sm:$0xf] %v862
          %895 = vst [vmem:[%s294 + $0x8] sm:$0xf] %v863
          %896 = vst [vmem:[%s294 + $0xc] sm:$0xf] %v864
          %897 = vst [vmem:[%s294 + $0x10] sm:$0xf] %v865
          %898 = vst [vmem:[%s294 + $0x14] sm:$0xf] %v866
          %899 = vst [vmem:[%s294 + $0x18] sm:$0xf] %v867
          %900 = vst [vmem:[%s294 + $0x1c] sm:$0xf] %v868
          %901 = vst [vmem:[%s294 + $0x20] sm:$0xf] %v869
          %902 = vst [vmem:[%s294 + $0x24] sm:$0xf] %v870
          %903 = vst [vmem:[%s294 + $0x28] sm:$0xf] %v871
          %904 = vst [vmem:[%s294 + $0x2c] sm:$0xf] %v872
          %905 = vst [vmem:[%s294 + $0x30] sm:$0xf] %v873
          %906 = vst [vmem:[%s294 + $0x34] sm:$0xf] %v874
          %907 = vst [vmem:[%s294 + $0x38] sm:$0xf] %v875
          %908 = vst [vmem:[%s294 + $0x3c] sm:$0xf] %v876
        $region60: #{tpu_custom_call.1} parent=35 // pred_fallthru
          _
        %s909 = sand.u32 %s159, 1
        %s910 = scalar_lea.sflag [#allocation8], %s909
        %s911 = sand.u32 %s159, 1
        %s912 = smul.addr %s911, 64
        %s913 = scalar_lea.vmem [#allocation12], %s912
        // Predicated region
        $region61: #{tpu_custom_call.1} parent=35 // pred_check
          %p914 = pneg %p169
        $region62: #{tpu_custom_call.1} parent=35 // pred_check_branch
          %916 = sbr.rel (%p914) target = $region64
        $region63: #{tpu_custom_call.1} parent=35 // pred_region
          %s917 = smul.u32 16, %s36
          %s919 = ssub.s32 1024, 1024
          %920 = vsyncadd %s910, %s919
          %s921 = smul.addr %s917, 64
          %s922 = scalar_lea.hbm %s6, %s921
          %s923 = sshll.u32 %s913, 4
          %s924 = int_to_ptr.vmem [resolvable:$true] %s923
          %929 = dma.vmem_to_hbm [thread:$0]  %s924, 1024, %s922, %s910, 64, 64, 4
        $region64: #{tpu_custom_call.1} parent=35 // pred_fallthru
          _
      $region36: #{tpu_custom_call.1} parent=5 // pred_fallthru
        _
      %p930 = scmp.le.s32.totalorder 2, %s27
      // Predicated region
      $region65: #{tpu_custom_call.1} parent=5 // pred_check
        %p931 = pneg %p930
      $region66: #{tpu_custom_call.1} parent=5 // pred_check_branch
        %933 = sbr.rel (%p931) target = $region68
      $region67: #{tpu_custom_call.1} parent=5 // pred_region
        %s934 = ssub.s32 %s27, 2
        // Predicated region
        $region69: #{tpu_custom_call.1} parent=67 // pred_check
          %p935 = pneg %p175
        $region70: #{tpu_custom_call.1} parent=67 // pred_check_branch
          %937 = sbr.rel (%p935) target = $region72
        $region71: #{tpu_custom_call.1} parent=67 // pred_region
          %s938 = sand.u32 %s160, 1
          %s939 = scalar_lea.sflag [#allocation8], %s938
          %s940 = sand.u32 %s160, 1
          %s941 = smul.addr %s940, 64
          %s942 = scalar_lea.vmem [#allocation12], %s941
          %943 = dma.done %s939, 1024
        $region72: #{tpu_custom_call.1} parent=67 // pred_fallthru
          _
      $region68: #{tpu_custom_call.1} parent=5 // pred_fallthru
        _
    $region6: #{tpu_custom_call.1} parent=1 // loop_footer
      %s31 = sadd.s32 1, %s27
    $region7: #{tpu_custom_call.1} parent=1 // loop_footer_branch
      %26 = sbr.rel target = $region3
    $region8: #{tpu_custom_call.1} parent=1 // loop_exit
      _
    %944 = vsyncpa [#allocation7], 1
    %s945 = scalar_lea.sflag [#allocation7], 1
    %946 = vsyncpa %s945, 1
    %947 = vsyncpa [#allocation10], 1
    %948 = vsyncpa [#allocation8], 1
    %s949 = scalar_lea.sflag [#allocation8], 1
    %950 = vsyncpa %s949, 1

</llo_original>
